<compile_context>
chip_gen: v7x
topology: tpu7x:2x2x1
jax: 0.10.0
libtpu: 0.0.40
codegen_flags: <defaults>
</compile_context>

<pallas_src>
import jax
import jax.numpy as jnp
from jax.experimental import pallas as pl
from jax.experimental.pallas import tpu as pltpu


def _decoder_kernel(xT_ref, w1_ref, b1_ref, w2_ref, b2_ref, w3_ref, b3_ref, oT_ref):
    """One node-tile of the 3-layer MLP decoder, feature-major layout.

    xT_ref : (latent, node_tile)        nodes on the lane axis (dense loads)
    wK_ref : (out_k, in_k)              nn.Linear weight layout
    bK_ref : (out_k, 1)                 broadcast across the node/lane axis
    oT_ref : (output_size, node_tile)   dense 128-lane stores
    """
    h = jnp.dot(w1_ref[...], xT_ref[...], preferred_element_type=jnp.float32)
    h = jnp.maximum(h + b1_ref[...], 0.0)

    h = jnp.dot(w2_ref[...], h, preferred_element_type=jnp.float32)
    h = jnp.maximum(h + b2_ref[...], 0.0)

    out = jnp.dot(w3_ref[...], h, preferred_element_type=jnp.float32) + b3_ref[...]
    oT_ref[...] = out.astype(oT_ref.dtype)


def graph_decoder_forward(x, params, *, node_tile=512):
    """Apply the node-feature MLP decoder to every node.

    x: (num_nodes, latent_size)
    params: dict with w1,b1,w2,b2,w3,b3 in nn.Linear layout
            (wK: (out_k, in_k), bK: (out_k,))
    """
    n_nodes, latent = x.shape
    out_size = params["w3"].shape[0]

    # Tile selection: one step for small graphs; otherwise lane-aligned tiles.
    # (On v7x, choose node_tile so the grid has >= 2 parallel steps.)
    if n_nodes <= node_tile:
        node_tile = n_nodes
    else:
        assert node_tile % 128 == 0, "node_tile must be a multiple of 128 lanes"
        assert n_nodes % node_tile == 0, "pad num_nodes to a multiple of node_tile"
    grid = (n_nodes // node_tile,)

    # Layout plumbing (XLA ops outside the kernel): nodes -> lane axis.
    xT = jnp.transpose(x)                      # (latent, num_nodes)
    b1 = params["b1"].reshape(-1, 1)
    b2 = params["b2"].reshape(-1, 1)
    b3 = params["b3"].reshape(-1, 1)

    # Weights/biases are tiny; each grid step gets the full (untiled) block.
    full = lambda arr: pl.BlockSpec(arr.shape, lambda i: (0, 0))

    outT = pl.pallas_call(
        _decoder_kernel,
        out_shape=jax.ShapeDtypeStruct((out_size, n_nodes), x.dtype),
        grid_spec=pltpu.PrefetchScalarGridSpec(
            num_scalar_prefetch=0,
            grid=grid,
            in_specs=[
                pl.BlockSpec((latent, node_tile), lambda i: (0, i)),
                full(params["w1"]), full(b1),
                full(params["w2"]), full(b2),
                full(params["w3"]), full(b3),
            ],
            out_specs=pl.BlockSpec((out_size, node_tile), lambda i: (0, i)),
        ),
        compiler_params=pltpu.CompilerParams(
            dimension_semantics=("parallel",),
        ),
    )(xT, params["w1"], b1, params["w2"], b2, params["w3"], b3)

    return jnp.transpose(outT)                 # (num_nodes, output_size)


def init_decoder_params(key, latent_size, output_size, num_mlp_layers):
    """Deterministic synthetic parameters for the decoder MLP (nn.Linear layout)."""
    widths = (num_mlp_layers + 1) * [latent_size] + [output_size]
    assert len(widths) - 1 == 3, "this script wires a 3-layer MLP (num_mlp_layers=2)"
    params = {}
    keys = jax.random.split(key, len(widths) - 1)
    for li, (fin, fout) in enumerate(zip(widths[:-1], widths[1:]), start=1):
        kw, kb = jax.random.split(keys[li - 1])
        scale = 1.0 / jnp.sqrt(jnp.float32(fin))
        params[f"w{li}"] = jax.random.uniform(
            kw, (fout, fin), jnp.float32, -scale, scale)
        params[f"b{li}"] = jax.random.uniform(
            kb, (fout,), jnp.float32, -scale, scale)
    return params


def _reference_forward(x, params):
    h = jnp.maximum(x @ params["w1"].T + params["b1"], 0.0)
    h = jnp.maximum(h @ params["w2"].T + params["b2"], 0.0)
    return h @ params["w3"].T + params["b3"]


if __name__ == "__main__":
    # GraphDecoder(output_size=8, latent_size=32, num_mlp_layers=2)
    latent_size = 32
    output_size = 8
    num_mlp_layers = 2
    num_nodes = 256  # batch of graph nodes (small demo -> single grid step)

    key = jax.random.PRNGKey(0)
    kx, kp = jax.random.split(key)
    x = jax.random.normal(kx, (num_nodes, latent_size), jnp.float32)
    params = init_decoder_params(kp, latent_size, output_size, num_mlp_layers)

    out = graph_decoder_forward(x, params)
    out = jax.block_until_ready(out)

    ref = _reference_forward(x, params)
    assert out.shape == (num_nodes, output_size)
    assert jnp.allclose(out, ref, atol=1e-4, rtol=1e-4)

    print("KERNEL_OK")
</pallas_src>

<mosaic_0001>
module attributes {stable_mosaic.version = 11 : i64} {
  func.func @_decoder_kernel(%arg0: i32, %arg1: memref<32x256xf32, #tpu.memory_space<vmem>>, %arg2: memref<32x32xf32, #tpu.memory_space<vmem>>, %arg3: memref<32x1xf32, #tpu.memory_space<vmem>>, %arg4: memref<32x32xf32, #tpu.memory_space<vmem>>, %arg5: memref<32x1xf32, #tpu.memory_space<vmem>>, %arg6: memref<8x32xf32, #tpu.memory_space<vmem>>, %arg7: memref<8x1xf32, #tpu.memory_space<vmem>>, %arg8: memref<8x256xf32, #tpu.memory_space<vmem>>) attributes {dimension_semantics = [#tpu.dimension_semantics<parallel>], iteration_bounds = array<i64: 1>, scalar_prefetch = 0 : i64, scratch_operands = 0 : i64, tpu.core_type = #tpu.core_type<tc>, window_params = [{transform_indices = @transform_0, window_bounds = array<i64: 32, 256>}, {pipeline_mode = #tpu.pipeline_mode<synchronous>, transform_indices = @transform_1, window_bounds = array<i64: 32, 32>}, {pipeline_mode = #tpu.pipeline_mode<synchronous>, transform_indices = @transform_2, window_bounds = array<i64: 32, 1>}, {pipeline_mode = #tpu.pipeline_mode<synchronous>, transform_indices = @transform_3, window_bounds = array<i64: 32, 32>}, {pipeline_mode = #tpu.pipeline_mode<synchronous>, transform_indices = @transform_4, window_bounds = array<i64: 32, 1>}, {pipeline_mode = #tpu.pipeline_mode<synchronous>, transform_indices = @transform_5, window_bounds = array<i64: 8, 32>}, {pipeline_mode = #tpu.pipeline_mode<synchronous>, transform_indices = @transform_6, window_bounds = array<i64: 8, 1>}, {transform_indices = @transform_7, window_bounds = array<i64: 8, 256>}]} {
    %c0 = arith.constant 0 : index
    %c0_0 = arith.constant 0 : index
    %0 = vector.load %arg2[%c0, %c0_0] : memref<32x32xf32, #tpu.memory_space<vmem>>, vector<32x32xf32>
    %c0_1 = arith.constant 0 : index
    %c0_2 = arith.constant 0 : index
    %1 = vector.load %arg1[%c0_1, %c0_2] : memref<32x256xf32, #tpu.memory_space<vmem>>, vector<32x256xf32>
    %cst = arith.constant dense<0.000000e+00> : vector<32x256xf32>
    %2 = tpu.matmul %0, %1, %cst {dimension_numbers = #tpu.dot_dimension_numbers<[1], [0], [0], [1], [0, 0, 1, 1], [], []>} : vector<32x32xf32>, vector<32x256xf32>, vector<32x256xf32> -> vector<32x256xf32>
    %c0_3 = arith.constant 0 : index
    %c0_4 = arith.constant 0 : index
    %3 = vector.load %arg3[%c0_3, %c0_4] : memref<32x1xf32, #tpu.memory_space<vmem>>, vector<32x1xf32>
    %4 = vector.broadcast %3 : vector<32x1xf32> to vector<32x256xf32>
    %5 = arith.addf %2, %4 : vector<32x256xf32>
    %cst_5 = arith.constant 0.000000e+00 : f32
    %6 = vector.broadcast %cst_5 : f32 to vector<32x256xf32>
    %7 = arith.maximumf %5, %6 : vector<32x256xf32>
    %c0_6 = arith.constant 0 : index
    %c0_7 = arith.constant 0 : index
    %8 = vector.load %arg4[%c0_6, %c0_7] : memref<32x32xf32, #tpu.memory_space<vmem>>, vector<32x32xf32>
    %cst_8 = arith.constant dense<0.000000e+00> : vector<32x256xf32>
    %9 = tpu.matmul %8, %7, %cst_8 {dimension_numbers = #tpu.dot_dimension_numbers<[1], [0], [0], [1], [0, 0, 1, 1], [], []>} : vector<32x32xf32>, vector<32x256xf32>, vector<32x256xf32> -> vector<32x256xf32>
    %c0_9 = arith.constant 0 : index
    %c0_10 = arith.constant 0 : index
    %10 = vector.load %arg5[%c0_9, %c0_10] : memref<32x1xf32, #tpu.memory_space<vmem>>, vector<32x1xf32>
    %11 = vector.broadcast %10 : vector<32x1xf32> to vector<32x256xf32>
    %12 = arith.addf %9, %11 : vector<32x256xf32>
    %cst_11 = arith.constant 0.000000e+00 : f32
    %13 = vector.broadcast %cst_11 : f32 to vector<32x256xf32>
    %14 = arith.maximumf %12, %13 : vector<32x256xf32>
    %c0_12 = arith.constant 0 : index
    %c0_13 = arith.constant 0 : index
    %15 = vector.load %arg6[%c0_12, %c0_13] : memref<8x32xf32, #tpu.memory_space<vmem>>, vector<8x32xf32>
    %cst_14 = arith.constant dense<0.000000e+00> : vector<8x256xf32>
    %16 = tpu.matmul %15, %14, %cst_14 {dimension_numbers = #tpu.dot_dimension_numbers<[1], [0], [0], [1], [0, 0, 1, 1], [], []>} : vector<8x32xf32>, vector<32x256xf32>, vector<8x256xf32> -> vector<8x256xf32>
    %c0_15 = arith.constant 0 : index
    %c0_16 = arith.constant 0 : index
    %17 = vector.load %arg7[%c0_15, %c0_16] : memref<8x1xf32, #tpu.memory_space<vmem>>, vector<8x1xf32>
    %18 = vector.broadcast %17 : vector<8x1xf32> to vector<8x256xf32>
    %19 = arith.addf %16, %18 : vector<8x256xf32>
    %c0_17 = arith.constant 0 : index
    %c0_18 = arith.constant 0 : index
    %20 = vector.load %arg8[%c0_17, %c0_18] : memref<8x256xf32, #tpu.memory_space<vmem>>, vector<8x256xf32>
    tpu.vector_store %arg8[%c0_17, %c0_18], %19 {strides = array<i32>} : memref<8x256xf32, #tpu.memory_space<vmem>>, vector<8x256xf32>,
    return
  }
  func.func @transform_0(%arg0: i32) -> (i32, i32) {
    %c0_i32 = arith.constant 0 : i32
    %c0_i32_0 = arith.constant 0 : i32
    return %c0_i32, %arg0 : i32, i32
  }
  func.func @transform_1(%arg0: i32) -> (i32, i32) {
    %c0_i32 = arith.constant 0 : i32
    %c0_i32_0 = arith.constant 0 : i32
    %c0_i32_1 = arith.constant 0 : i32
    return %c0_i32, %c0_i32_0 : i32, i32
  }
  func.func @transform_2(%arg0: i32) -> (i32, i32) {
    %c0_i32 = arith.constant 0 : i32
    %c0_i32_0 = arith.constant 0 : i32
    %c0_i32_1 = arith.constant 0 : i32
    return %c0_i32, %c0_i32_0 : i32, i32
  }
  func.func @transform_3(%arg0: i32) -> (i32, i32) {
    %c0_i32 = arith.constant 0 : i32
    %c0_i32_0 = arith.constant 0 : i32
    %c0_i32_1 = arith.constant 0 : i32
    return %c0_i32, %c0_i32_0 : i32, i32
  }
  func.func @transform_4(%arg0: i32) -> (i32, i32) {
    %c0_i32 = arith.constant 0 : i32
    %c0_i32_0 = arith.constant 0 : i32
    %c0_i32_1 = arith.constant 0 : i32
    return %c0_i32, %c0_i32_0 : i32, i32
  }
  func.func @transform_5(%arg0: i32) -> (i32, i32) {
    %c0_i32 = arith.constant 0 : i32
    %c0_i32_0 = arith.constant 0 : i32
    %c0_i32_1 = arith.constant 0 : i32
    return %c0_i32, %c0_i32_0 : i32, i32
  }
  func.func @transform_6(%arg0: i32) -> (i32, i32) {
    %c0_i32 = arith.constant 0 : i32
    %c0_i32_0 = arith.constant 0 : i32
    %c0_i32_1 = arith.constant 0 : i32
    return %c0_i32, %c0_i32_0 : i32, i32
  }
  func.func @transform_7(%arg0: i32) -> (i32, i32) {
    %c0_i32 = arith.constant 0 : i32
    %c0_i32_0 = arith.constant 0 : i32
    return %c0_i32, %arg0 : i32, i32
  }
}

</mosaic_0001>

<llo_original>
// kernel: tpu_custom_call.1
$region0: #{tpu_custom_call.1}
  #allocation0 [shape = 'u32[]', space=smem, size = 0x4, offset = 0x4, fixed_abs, tag = 'smem constant byte address 0x4 - core index']
  #allocation1 [shape = 'u32[144,128]{1,0:T(1,128)}', space=vmem, size = 0x12000, scoped, tag = 'internal scratch']
  %s0 = inlined_call_operand.vmem [shape: f32[32,256], index: 0, kind: input, shape index: {}]
  %s1 = inlined_call_operand.hbm [shape: f32[32,32], index: 1, kind: input, shape index: {}]
  %s2 = inlined_call_operand.vmem [shape: f32[32,1], index: 2, kind: input, shape index: {}]
  %s3 = inlined_call_operand.hbm [shape: f32[32,32], index: 3, kind: input, shape index: {}]
  %s4 = inlined_call_operand.vmem [shape: f32[32,1], index: 4, kind: input, shape index: {}]
  %s5 = inlined_call_operand.vmem [shape: f32[8,32], index: 5, kind: input, shape index: {}]
  %s6 = inlined_call_operand.vmem [shape: f32[8,1], index: 6, kind: input, shape index: {}]
  %s7 = inlined_call_operand.hbm [shape: f32[8,256], index: 7, kind: output, shape index: {}]
  %s8 = sld [smem:[#allocation0]]
  $region46: #{tpu_custom_call.1} parent=0
    _
  %s10 = ssub.s32 1, %s8
  %s11 = scalar_select 0, %s10, %s8
  $region1: #{tpu_custom_call.1} parent=0
    #allocation2 [shape = 'u8[16384]{0}', space=vmem, size = 0x4000, scoped, tag = 'input window, operand 1, single buffered']
    #allocation3 [shape = 's32[1]{0}', space=sflag, size = 0x4, scoped, tag = 'scoped memory for tpu_custom_call.1']
    #allocation4 [shape = 's32[1]{0}', space=sflag, size = 0x4, scoped, tag = 'scoped memory for tpu_custom_call.1']
    #allocation5 [shape = 'u8[16384]{0}', space=vmem, size = 0x4000, scoped, tag = 'input window, operand 3, single buffered']
    #allocation6 [shape = 's32[1]{0}', space=sflag, size = 0x4, scoped, tag = 'scoped memory for tpu_custom_call.1']
    #allocation7 [shape = 'u8[8192]{0}', space=vmem, size = 0x2000, scoped, tag = 'output window, operand 0, single buffered']
    %12 = vsyncpa [#allocation3], 0
    %13 = vsyncpa [#allocation6], 0
    %14 = vsyncpa [#allocation4], 0
    // Predicated region
    $region2: #{tpu_custom_call.1} parent=1 // pred_check
      _
    $region3: #{tpu_custom_call.1} parent=1 // pred_check_branch
      %16 = sbr.rel (0) target = $region5
    $region4: #{tpu_custom_call.1} parent=1 // pred_region
      _
    $region5: #{tpu_custom_call.1} parent=1 // pred_fallthru
      _
    // Predicated region
    $region6: #{tpu_custom_call.1} parent=1 // pred_check
      _
    $region7: #{tpu_custom_call.1} parent=1 // pred_check_branch
      %18 = sbr.rel (0) target = $region9
    $region8: #{tpu_custom_call.1} parent=1 // pred_region
      %s20 = ssub.s32 512, 512
      %21 = vsyncadd [#allocation3], %s20
      %s22 = sshll.u32 [#allocation2], 4
      %s23 = int_to_ptr.vmem [resolvable:$true] %s22
      %28 = dma.hbm_to_vmem [thread:$0]  %s1, 512, %s23, [#allocation3], 128, 128, 8
    $region9: #{tpu_custom_call.1} parent=1 // pred_fallthru
      _
    // Predicated region
    $region10: #{tpu_custom_call.1} parent=1 // pred_check
      _
    $region11: #{tpu_custom_call.1} parent=1 // pred_check_branch
      %30 = sbr.rel (0) target = $region13
    $region12: #{tpu_custom_call.1} parent=1 // pred_region
      _
    $region13: #{tpu_custom_call.1} parent=1 // pred_fallthru
      _
    // Predicated region
    $region14: #{tpu_custom_call.1} parent=1 // pred_check
      _
    $region15: #{tpu_custom_call.1} parent=1 // pred_check_branch
      %32 = sbr.rel (0) target = $region17
    $region16: #{tpu_custom_call.1} parent=1 // pred_region
      %s34 = ssub.s32 512, 512
      %35 = vsyncadd [#allocation6], %s34
      %s36 = sshll.u32 [#allocation5], 4
      %s37 = int_to_ptr.vmem [resolvable:$true] %s36
      %42 = dma.hbm_to_vmem [thread:$0]  %s3, 512, %s37, [#allocation6], 128, 128, 8
    $region17: #{tpu_custom_call.1} parent=1 // pred_fallthru
      _
    // Predicated region
    $region18: #{tpu_custom_call.1} parent=1 // pred_check
      _
    $region19: #{tpu_custom_call.1} parent=1 // pred_check_branch
      %44 = sbr.rel (0) target = $region21
    $region20: #{tpu_custom_call.1} parent=1 // pred_region
      _
    $region21: #{tpu_custom_call.1} parent=1 // pred_fallthru
      _
    // Predicated region
    $region22: #{tpu_custom_call.1} parent=1 // pred_check
      _
    $region23: #{tpu_custom_call.1} parent=1 // pred_check_branch
      %46 = sbr.rel (0) target = $region25
    $region24: #{tpu_custom_call.1} parent=1 // pred_region
      _
    $region25: #{tpu_custom_call.1} parent=1 // pred_fallthru
      _
    // Predicated region
    $region26: #{tpu_custom_call.1} parent=1 // pred_check
      _
    $region27: #{tpu_custom_call.1} parent=1 // pred_check_branch
      %48 = sbr.rel (0) target = $region29
    $region28: #{tpu_custom_call.1} parent=1 // pred_region
      _
    $region29: #{tpu_custom_call.1} parent=1 // pred_fallthru
      _
    // Predicated region
    $region30: #{tpu_custom_call.1} parent=1 // pred_check
      _
    $region31: #{tpu_custom_call.1} parent=1 // pred_check_branch
      %50 = sbr.rel (0) target = $region33
    $region32: #{tpu_custom_call.1} parent=1 // pred_region
      %51 = dma.done [#allocation3], 512
    $region33: #{tpu_custom_call.1} parent=1 // pred_fallthru
      _
    // Predicated region
    $region34: #{tpu_custom_call.1} parent=1 // pred_check
      _
    $region35: #{tpu_custom_call.1} parent=1 // pred_check_branch
      %53 = sbr.rel (0) target = $region37
    $region36: #{tpu_custom_call.1} parent=1 // pred_region
      %54 = dma.done [#allocation6], 512
    $region37: #{tpu_custom_call.1} parent=1 // pred_fallthru
      _
    %v55 = vld [vmem:[#allocation2] sm:$0xff]
    %v56 = vld [vmem:[#allocation2 + $0x8] sm:$0xff]
    %v57 = vld [vmem:[#allocation2 + $0x10] sm:$0xff]
    %v58 = vld [vmem:[#allocation2 + $0x18] sm:$0xff]
    %v59 = vld [vmem:[%s0] sm:$0xff]
    %v60 = vld [vmem:[%s0 + $0x8] sm:$0xff]
    %v61 = vld [vmem:[%s0 + $0x10] sm:$0xff]
    %v62 = vld [vmem:[%s0 + $0x18] sm:$0xff]
    %v63 = vld [vmem:[%s0 + $0x20] sm:$0xff]
    %v64 = vld [vmem:[%s0 + $0x28] sm:$0xff]
    %v65 = vld [vmem:[%s0 + $0x30] sm:$0xff]
    %v66 = vld [vmem:[%s0 + $0x38] sm:$0xff]
    %v67 = vld [vmem:[%s2] sm:$0xff]
    %v68 = vld [vmem:[%s2 + $0x8] sm:$0xff]
    %v69 = vld [vmem:[%s2 + $0x10] sm:$0xff]
    %v70 = vld [vmem:[%s2 + $0x18] sm:$0xff]
    %72 = vset.pattern.permute.xlu0 0
    %73 = vperm.xlu0 %72, %v67
    %v74 = vpop.permute.xlu0 %73
    %77 = vset.pattern.permute.xlu0 0
    %78 = vperm.xlu0 %77, %v68
    %v79 = vpop.permute.xlu0 %78
    %82 = vset.pattern.permute.xlu0 0
    %83 = vperm.xlu0 %82, %v69
    %v84 = vpop.permute.xlu0 %83
    %87 = vset.pattern.permute.xlu0 0
    %88 = vperm.xlu0 %87, %v70
    %v89 = vpop.permute.xlu0 %88
    %vm91 = vcmask 261120
    %v93 = vsel %vm91, %v55, 0
    %v96 = vsel %vm91, %v56, 0
    %v99 = vsel %vm91, %v57, 0
    %v102 = vsel %vm91, %v58, 0
    %104 = vmatprep.subr.mxu0 %v60
    %105 = vmatpush1.msra.mxu0 %v59
    %106 = vmatprep.subr.mxu0 %v62
    %107 = vmatpush1.msra.mxu0 %v61
    %108 = vmatprep.subr.mxu0 %v64
    %109 = vmatpush1.msra.mxu0 %v63
    %110 = vmatprep.subr.mxu0 %v66
    %111 = vmatpush1.msra.mxu0 %v65
    %112 = vmatprep.subr.mxu0 0.0
    %113 = vmatpush1.msra.mxu0 0.0
    %114 = vmatprep.subr.mxu0 0.0
    %115 = vmatpush1.msra.mxu0 0.0
    %116 = vmatprep.subr.mxu0 0.0
    %117 = vmatpush1.msra.mxu0 0.0
    %118 = vmatprep.subr.mxu0 0.0
    %119 = vmatpush1.msra.mxu0 0.0
    %120 = vmatprep.subr.mxu0 0.0
    %121 = vmatpush1.msra.mxu0 0.0
    %122 = vmatprep.subr.mxu0 0.0
    %123 = vmatpush1.msra.mxu0 0.0
    %124 = vmatprep.subr.mxu0 0.0
    %125 = vmatpush1.msra.mxu0 0.0
    %126 = vmatprep.subr.mxu0 0.0
    %127 = vmatpush1.msra.mxu0 0.0
    %128 = vmatprep.subr.mxu0 0.0
    %129 = vmatpush1.msra.mxu0 0.0
    %130 = vmatprep.subr.mxu0 0.0
    %131 = vmatpush1.msra.mxu0 0.0
    %132 = vmatprep.subr.mxu0 0.0
    %133 = vmatpush1.msra.mxu0 0.0
    %134 = vmatprep.subr.mxu0 0.0
    %135 = vmatpush1.msra.mxu0 0.0
    %136 = vmatprep.subr.mxu0 0.0
    %137 = vmatpush1.msra.mxu0 0.0
    %138 = vmatprep.subr.mxu0 0.0
    %139 = vmatpush1.msra.mxu0 0.0
    %140 = vmatprep.subr.mxu0 0.0
    %141 = vmatpush1.msra.mxu0 0.0
    %142 = vmatprep.subr.mxu0 0.0
    %143 = vmatpush1.msra.mxu0 0.0
    %144 = vmatprep.subr.mxu0 0.0
    %145 = vmatpush1.msra.mxu0 0.0
    %146 = vmatprep.subr.mxu0 0.0
    %147 = vmatpush1.msra.mxu0 0.0
    %148 = vmatprep.subr.mxu0 0.0
    %149 = vmatpush1.msra.mxu0 0.0
    %150 = vmatprep.subr.mxu0 0.0
    %151 = vmatpush1.msra.mxu0 0.0
    %152 = vmatprep.subr.mxu0 0.0
    %153 = vmatpush1.msra.mxu0 0.0
    %154 = vmatprep.subr.mxu0 0.0
    %155 = vmatpush1.msra.mxu0 0.0
    %156 = vmatprep.subr.mxu0 0.0
    %157 = vmatpush1.msra.mxu0 0.0
    %158 = vmatprep.subr.mxu0 0.0
    %159 = vmatpush1.msra.mxu0 0.0
    %160 = vmatprep.subr.mxu0 0.0
    %161 = vmatpush1.msra.mxu0 0.0
    %162 = vmatprep.subr.mxu0 0.0
    %163 = vmatpush1.msra.mxu0 0.0
    %164 = vmatprep.subr.mxu0 0.0
    %165 = vmatpush1.msra.mxu0 0.0
    %166 = vmatprep.subr.mxu0 0.0
    %167 = vmatpush1.msra.mxu0 0.0
    %168 = vmatprep.mubr.f32.mxu0 0.0
    %169 = vmatmul.mubr.f32.gmra.mrb[0].mxu0 %v93
    %v170 = vpop.f32.mrb[0].mxu0
    %v171 = vadd.f32 %v74, %v170
    %v172 = vpop.f32.mrb[0].mxu0
    %v173 = vadd.f32 %v74, %v172
    %174 = vmatprep.mubr.f32.mxu0 0.0
    %175 = vmatmul.mubr.f32.gmra.mrb[0].mxu0 %v96
    %v176 = vpop.f32.mrb[0].mxu0
    %v177 = vadd.f32 %v79, %v176
    %v178 = vpop.f32.mrb[0].mxu0
    %v179 = vadd.f32 %v79, %v178
    %180 = vmatprep.mubr.f32.mxu0 0.0
    %181 = vmatmul.mubr.f32.gmra.mrb[0].mxu0 %v99
    %v182 = vpop.f32.mrb[0].mxu0
    %v183 = vadd.f32 %v84, %v182
    %v184 = vpop.f32.mrb[0].mxu0
    %v185 = vadd.f32 %v84, %v184
    %186 = vmatprep.mubr.f32.mxu0 0.0
    %187 = vmatmul.mubr.f32.gmra.mrb[0].mxu0 %v102
    %v188 = vpop.f32.mrb[0].mxu0
    %v189 = vadd.f32 %v89, %v188
    %v190 = vpop.f32.mrb[0].mxu0
    %v191 = vadd.f32 %v89, %v190
    %192 = vdwg.mxu0
    %v193 = vmax.f32 %v171, 0.0
    %v194 = vmax.f32 %v173, 0.0
    %v195 = vmax.f32 %v177, 0.0
    %v196 = vmax.f32 %v179, 0.0
    %v197 = vmax.f32 %v183, 0.0
    %v198 = vmax.f32 %v185, 0.0
    %v199 = vmax.f32 %v189, 0.0
    %v200 = vmax.f32 %v191, 0.0
    %v201 = vld [vmem:[#allocation5] sm:$0xff]
    %v202 = vld [vmem:[#allocation5 + $0x8] sm:$0xff]
    %v203 = vld [vmem:[#allocation5 + $0x10] sm:$0xff]
    %v204 = vld [vmem:[#allocation5 + $0x18] sm:$0xff]
    %v205 = vld [vmem:[%s4] sm:$0xff]
    %v206 = vld [vmem:[%s4 + $0x8] sm:$0xff]
    %v207 = vld [vmem:[%s4 + $0x10] sm:$0xff]
    %v208 = vld [vmem:[%s4 + $0x18] sm:$0xff]
    %210 = vset.pattern.permute.xlu0 0
    %211 = vperm.xlu0 %210, %v205
    %v212 = vpop.permute.xlu0 %211
    %215 = vset.pattern.permute.xlu0 0
    %216 = vperm.xlu0 %215, %v206
    %v217 = vpop.permute.xlu0 %216
    %220 = vset.pattern.permute.xlu0 0
    %221 = vperm.xlu0 %220, %v207
    %v222 = vpop.permute.xlu0 %221
    %225 = vset.pattern.permute.xlu0 0
    %226 = vperm.xlu0 %225, %v208
    %v227 = vpop.permute.xlu0 %226
    %v230 = vsel %vm91, %v201, 0
    %v233 = vsel %vm91, %v202, 0
    %v236 = vsel %vm91, %v203, 0
    %v239 = vsel %vm91, %v204, 0
    %241 = vmatprep.subr.mxu0 %v194
    %242 = vmatpush1.msra.mxu0 %v193
    %243 = vmatprep.subr.mxu0 %v196
    %244 = vmatpush1.msra.mxu0 %v195
    %245 = vmatprep.subr.mxu0 %v198
    %246 = vmatpush1.msra.mxu0 %v197
    %247 = vmatprep.subr.mxu0 %v200
    %248 = vmatpush1.msra.mxu0 %v199
    %249 = vmatprep.subr.mxu0 0.0
    %250 = vmatpush1.msra.mxu0 0.0
    %251 = vmatprep.subr.mxu0 0.0
    %252 = vmatpush1.msra.mxu0 0.0
    %253 = vmatprep.subr.mxu0 0.0
    %254 = vmatpush1.msra.mxu0 0.0
    %255 = vmatprep.subr.mxu0 0.0
    %256 = vmatpush1.msra.mxu0 0.0
    %257 = vmatprep.subr.mxu0 0.0
    %258 = vmatpush1.msra.mxu0 0.0
    %259 = vmatprep.subr.mxu0 0.0
    %260 = vmatpush1.msra.mxu0 0.0
    %261 = vmatprep.subr.mxu0 0.0
    %262 = vmatpush1.msra.mxu0 0.0
    %263 = vmatprep.subr.mxu0 0.0
    %264 = vmatpush1.msra.mxu0 0.0
    %265 = vmatprep.subr.mxu0 0.0
    %266 = vmatpush1.msra.mxu0 0.0
    %267 = vmatprep.subr.mxu0 0.0
    %268 = vmatpush1.msra.mxu0 0.0
    %269 = vmatprep.subr.mxu0 0.0
    %270 = vmatpush1.msra.mxu0 0.0
    %271 = vmatprep.subr.mxu0 0.0
    %272 = vmatpush1.msra.mxu0 0.0
    %273 = vmatprep.subr.mxu0 0.0
    %274 = vmatpush1.msra.mxu0 0.0
    %275 = vmatprep.subr.mxu0 0.0
    %276 = vmatpush1.msra.mxu0 0.0
    %277 = vmatprep.subr.mxu0 0.0
    %278 = vmatpush1.msra.mxu0 0.0
    %279 = vmatprep.subr.mxu0 0.0
    %280 = vmatpush1.msra.mxu0 0.0
    %281 = vmatprep.subr.mxu0 0.0
    %282 = vmatpush1.msra.mxu0 0.0
    %283 = vmatprep.subr.mxu0 0.0
    %284 = vmatpush1.msra.mxu0 0.0
    %285 = vmatprep.subr.mxu0 0.0
    %286 = vmatpush1.msra.mxu0 0.0
    %287 = vmatprep.subr.mxu0 0.0
    %288 = vmatpush1.msra.mxu0 0.0
    %289 = vmatprep.subr.mxu0 0.0
    %290 = vmatpush1.msra.mxu0 0.0
    %291 = vmatprep.subr.mxu0 0.0
    %292 = vmatpush1.msra.mxu0 0.0
    %293 = vmatprep.subr.mxu0 0.0
    %294 = vmatpush1.msra.mxu0 0.0
    %295 = vmatprep.subr.mxu0 0.0
    %296 = vmatpush1.msra.mxu0 0.0
    %297 = vmatprep.subr.mxu0 0.0
    %298 = vmatpush1.msra.mxu0 0.0
    %299 = vmatprep.subr.mxu0 0.0
    %300 = vmatpush1.msra.mxu0 0.0
    %301 = vmatprep.subr.mxu0 0.0
    %302 = vmatpush1.msra.mxu0 0.0
    %303 = vmatprep.subr.mxu0 0.0
    %304 = vmatpush1.msra.mxu0 0.0
    %305 = vmatprep.mubr.f32.mxu0 0.0
    %306 = vmatmul.mubr.f32.gmra.mrb[0].mxu0 %v230
    %v307 = vpop.f32.mrb[0].mxu0
    %v308 = vadd.f32 %v212, %v307
    %v309 = vpop.f32.mrb[0].mxu0
    %v310 = vadd.f32 %v212, %v309
    %311 = vmatprep.mubr.f32.mxu0 0.0
    %312 = vmatmul.mubr.f32.gmra.mrb[0].mxu0 %v233
    %v313 = vpop.f32.mrb[0].mxu0
    %v314 = vadd.f32 %v217, %v313
    %v315 = vpop.f32.mrb[0].mxu0
    %v316 = vadd.f32 %v217, %v315
    %317 = vmatprep.mubr.f32.mxu0 0.0
    %318 = vmatmul.mubr.f32.gmra.mrb[0].mxu0 %v236
    %v319 = vpop.f32.mrb[0].mxu0
    %v320 = vadd.f32 %v222, %v319
    %v321 = vpop.f32.mrb[0].mxu0
    %v322 = vadd.f32 %v222, %v321
    %323 = vmatprep.mubr.f32.mxu0 0.0
    %324 = vmatmul.mubr.f32.gmra.mrb[0].mxu0 %v239
    %v325 = vpop.f32.mrb[0].mxu0
    %v326 = vadd.f32 %v227, %v325
    %v327 = vpop.f32.mrb[0].mxu0
    %v328 = vadd.f32 %v227, %v327
    %329 = vdwg.mxu0
    %v330 = vmax.f32 %v308, 0.0
    %v331 = vmax.f32 %v310, 0.0
    %v332 = vmax.f32 %v314, 0.0
    %v333 = vmax.f32 %v316, 0.0
    %v334 = vmax.f32 %v320, 0.0
    %v335 = vmax.f32 %v322, 0.0
    %v336 = vmax.f32 %v326, 0.0
    %v337 = vmax.f32 %v328, 0.0
    %v338 = vld [vmem:[%s5] sm:$0xff]
    %v339 = vld [vmem:[%s6] sm:$0xff]
    %341 = vset.pattern.permute.xlu0 0
    %342 = vperm.xlu0 %341, %v339
    %v343 = vpop.permute.xlu0 %342
    %v346 = vsel %vm91, %v338, 0
    %348 = vmatprep.subr.mxu0 %v331
    %349 = vmatpush1.msra.mxu0 %v330
    %350 = vmatprep.subr.mxu0 %v333
    %351 = vmatpush1.msra.mxu0 %v332
    %352 = vmatprep.subr.mxu0 %v335
    %353 = vmatpush1.msra.mxu0 %v334
    %354 = vmatprep.subr.mxu0 %v337
    %355 = vmatpush1.msra.mxu0 %v336
    %356 = vmatprep.subr.mxu0 0.0
    %357 = vmatpush1.msra.mxu0 0.0
    %358 = vmatprep.subr.mxu0 0.0
    %359 = vmatpush1.msra.mxu0 0.0
    %360 = vmatprep.subr.mxu0 0.0
    %361 = vmatpush1.msra.mxu0 0.0
    %362 = vmatprep.subr.mxu0 0.0
    %363 = vmatpush1.msra.mxu0 0.0
    %364 = vmatprep.subr.mxu0 0.0
    %365 = vmatpush1.msra.mxu0 0.0
    %366 = vmatprep.subr.mxu0 0.0
    %367 = vmatpush1.msra.mxu0 0.0
    %368 = vmatprep.subr.mxu0 0.0
    %369 = vmatpush1.msra.mxu0 0.0
    %370 = vmatprep.subr.mxu0 0.0
    %371 = vmatpush1.msra.mxu0 0.0
    %372 = vmatprep.subr.mxu0 0.0
    %373 = vmatpush1.msra.mxu0 0.0
    %374 = vmatprep.subr.mxu0 0.0
    %375 = vmatpush1.msra.mxu0 0.0
    %376 = vmatprep.subr.mxu0 0.0
    %377 = vmatpush1.msra.mxu0 0.0
    %378 = vmatprep.subr.mxu0 0.0
    %379 = vmatpush1.msra.mxu0 0.0
    %380 = vmatprep.subr.mxu0 0.0
    %381 = vmatpush1.msra.mxu0 0.0
    %382 = vmatprep.subr.mxu0 0.0
    %383 = vmatpush1.msra.mxu0 0.0
    %384 = vmatprep.subr.mxu0 0.0
    %385 = vmatpush1.msra.mxu0 0.0
    %386 = vmatprep.subr.mxu0 0.0
    %387 = vmatpush1.msra.mxu0 0.0
    %388 = vmatprep.subr.mxu0 0.0
    %389 = vmatpush1.msra.mxu0 0.0
    %390 = vmatprep.subr.mxu0 0.0
    %391 = vmatpush1.msra.mxu0 0.0
    %392 = vmatprep.subr.mxu0 0.0
    %393 = vmatpush1.msra.mxu0 0.0
    %394 = vmatprep.subr.mxu0 0.0
    %395 = vmatpush1.msra.mxu0 0.0
    %396 = vmatprep.subr.mxu0 0.0
    %397 = vmatpush1.msra.mxu0 0.0
    %398 = vmatprep.subr.mxu0 0.0
    %399 = vmatpush1.msra.mxu0 0.0
    %400 = vmatprep.subr.mxu0 0.0
    %401 = vmatpush1.msra.mxu0 0.0
    %402 = vmatprep.subr.mxu0 0.0
    %403 = vmatpush1.msra.mxu0 0.0
    %404 = vmatprep.subr.mxu0 0.0
    %405 = vmatpush1.msra.mxu0 0.0
    %406 = vmatprep.subr.mxu0 0.0
    %407 = vmatpush1.msra.mxu0 0.0
    %408 = vmatprep.subr.mxu0 0.0
    %409 = vmatpush1.msra.mxu0 0.0
    %410 = vmatprep.subr.mxu0 0.0
    %411 = vmatpush1.msra.mxu0 0.0
    %412 = vmatprep.mubr.f32.mxu0 0.0
    %413 = vmatmul.mubr.f32.gmra.mrb[0].mxu0 %v346
    %v414 = vpop.f32.mrb[0].mxu0
    %v415 = vadd.f32 %v343, %v414
    %v416 = vpop.f32.mrb[0].mxu0
    %v417 = vadd.f32 %v343, %v416
    %418 = vdwg.mxu0
    %419 = vst [vmem:[#allocation7] sm:$0xff] %v415
    %420 = vst [vmem:[#allocation7 + $0x8] sm:$0xff] %v417
    // Predicated region
    $region38: #{tpu_custom_call.1} parent=1 // pred_check
      _
    $region39: #{tpu_custom_call.1} parent=1 // pred_check_branch
      %422 = sbr.rel (0) target = $region41
    $region40: #{tpu_custom_call.1} parent=1 // pred_region
      %s424 = ssub.s32 256, 256
      %425 = vsyncadd [#allocation4], %s424
      %s427 = sshll.u32 [#allocation7], 4
      %s428 = int_to_ptr.vmem [resolvable:$true] %s427
      %430 = dma.vmem_to_hbm [thread:$0]  %s428, 256, %s7, [#allocation4]
    $region41: #{tpu_custom_call.1} parent=1 // pred_fallthru
      _
    // Predicated region
    $region42: #{tpu_custom_call.1} parent=1 // pred_check
      _
    $region43: #{tpu_custom_call.1} parent=1 // pred_check_branch
      %432 = sbr.rel (0) target = $region45
    $region44: #{tpu_custom_call.1} parent=1 // pred_region
      %433 = dma.done [#allocation4], 256
    $region45: #{tpu_custom_call.1} parent=1 // pred_fallthru
      _
    %434 = vsyncpa [#allocation3], 1
    %435 = vsyncpa [#allocation6], 1
    %436 = vsyncpa [#allocation4], 1

</llo_original>
